<compile_context>
chip_gen: v5e
topology: v5e:2x2
jax: 0.10.0
libtpu: 0.0.40
codegen_flags: <defaults>
</compile_context>

<pallas_src>
import functools

import jax
import jax.numpy as jnp
from jax.experimental import pallas as pl
from jax.experimental.pallas import tpu as pltpu


def mlp_kernel(x_ref,
               w1_ref, b1_ref,
               w2_ref, b2_ref,
               w3_ref, b3_ref,
               w4_ref, b4_ref,
               w5_ref, b5_ref,   # w5 passed as a (1, 32) row, b5 as (1, 1)
               o_ref,
               *, compute_dtype):
    # Whole 5-layer MLP fused: matmuls on the MXU, tanh on the EUP.
    h = x_ref[...]

    def layer(h, w_ref, b_ref):
        return (jnp.dot(h.astype(compute_dtype), w_ref[...],
                        preferred_element_type=jnp.float32)
                + b_ref[...])

    h = jnp.tanh(layer(h, w1_ref, b1_ref))   # (tb, 256)
    h = jnp.tanh(layer(h, w2_ref, b2_ref))   # (tb, 128)
    h = jnp.tanh(layer(h, w3_ref, b3_ref))   # (tb, 64)
    h = jnp.tanh(layer(h, w4_ref, b4_ref))   # (tb, 32)

    # Final layer as a lane-dense (1, tb) row:
    #   out_row[0, i] = sum_k w5_row[0, k] * h[i, k] + b5
    # i.e. w5_row @ h.T -- dot_general with rhs-contraction on dim 1 (the
    # same MXU-native pattern as q @ k.T in attention), no explicit transpose.
    out_row = jax.lax.dot_general(
        w5_ref[...], h.astype(compute_dtype),
        (((1,), (1,)), ((), ())),
        preferred_element_type=jnp.float32) + b5_ref[...]
    o_ref[...] = out_row.astype(o_ref.dtype)


def make_params(key, input_size):
    """PyTorch nn.Linear-style init: U(-1/sqrt(fan_in), 1/sqrt(fan_in))."""
    dims = [input_size, 256, 128, 64, 32, 1]
    params = []
    for li in range(5):
        fan_in, fan_out = dims[li], dims[li + 1]
        key, kw, kb = jax.random.split(key, 3)
        bound = 1.0 / jnp.sqrt(jnp.float32(fan_in))
        # stored as [in, out] (transposed vs. PyTorch's [out, in])
        w = jax.random.uniform(kw, (fan_in, fan_out), jnp.float32, -bound, bound)
        b = jax.random.uniform(kb, (1, fan_out), jnp.float32, -bound, bound)
        params.append((w, b))
    return params


def _round_up(a, m):
    return (a + m - 1) // m * m


@functools.partial(jax.jit, static_argnames=("tile_b", "compute_dtype"))
def mlp_forward(x, params, *, tile_b=512, compute_dtype=jnp.float32):
    B, in_dim = x.shape

    # Effective batch tile: lane-dense multiple of 128, never larger than
    # needed.  For large B prefer tile_b in 512..2048 (multiple of 256 on
    # v6e/v7x) while keeping B/tile_b >= 4 so v7x's two TensorCores both get
    # work via the "parallel" grid axis.
    tb = min(_round_up(tile_b, 128), _round_up(B, 128))
    b_pad = _round_up(B, tb)
    num_tiles = b_pad // tb

    if b_pad != B:
        x = jnp.pad(x, ((0, b_pad - B), (0, 0)))
    x = x.astype(compute_dtype)

    (w1, b1), (w2, b2), (w3, b3), (w4, b4), (w5, b5) = params
    cd = compute_dtype
    flat_params = [
        w1.astype(cd), b1, w2.astype(cd), b2, w3.astype(cd), b3,
        w4.astype(cd), b4,
        w5.T.astype(cd),   # (1, 32) row for the lane-dense final layer
        b5,                # (1, 1)
    ]

    # x tiled along batch; weights/biases replicated (full-array blocks with a
    # constant index_map -> fetched once, kept resident in VMEM).
    in_specs = [pl.BlockSpec((tb, in_dim), lambda i: (i, 0))]
    in_specs += [pl.BlockSpec(p.shape, lambda i: (0, 0)) for p in flat_params]
    # Lane-dense output: (1, b_pad) array written in (1, tb) blocks.
    out_spec = pl.BlockSpec((1, tb), lambda i: (0, i))

    out_row = pl.pallas_call(
        functools.partial(mlp_kernel, compute_dtype=compute_dtype),
        out_shape=jax.ShapeDtypeStruct((1, b_pad), jnp.float32),
        grid_spec=pltpu.PrefetchScalarGridSpec(
            num_scalar_prefetch=0,
            grid=(num_tiles,),
            in_specs=in_specs,
            out_specs=out_spec,
        ),
        compiler_params=pltpu.CompilerParams(
            dimension_semantics=("parallel",)),
    )(x, *flat_params)

    # (1, b_pad) -> (B, 1), dropping the padded rows.
    return out_row.reshape(b_pad, 1)[:B]


def mlp_reference(x, params):
    h = x
    for li, (w, b) in enumerate(params):
        h = h @ w + b
        if li < 4:
            h = jnp.tanh(h)
    return h


if __name__ == "__main__":
    key = jax.random.PRNGKey(0)
    k_x, k_p, k_x2 = jax.random.split(key, 3)

    input_size = 16
    params = make_params(k_p, input_size)

    # Small deterministic check (B=8 -> padded to one 128-row tile).
    x_small = jax.random.normal(k_x, (8, input_size), jnp.float32)
    out_small = jax.block_until_ready(mlp_forward(x_small, params))
    ref_small = mlp_reference(x_small, params)
    assert out_small.shape == (8, 1), out_small.shape
    assert jnp.allclose(out_small, ref_small, atol=1e-5, rtol=1e-5), (
        f"max abs diff {jnp.max(jnp.abs(out_small - ref_small))}")

    # Ragged larger batch exercises the multi-step grid + padding path.
    x_big = jax.random.normal(k_x2, (1000, input_size), jnp.float32)
    out_big = jax.block_until_ready(mlp_forward(x_big, params, tile_b=256))
    ref_big = mlp_reference(x_big, params)
    assert out_big.shape == (1000, 1), out_big.shape
    assert jnp.allclose(out_big, ref_big, atol=1e-4, rtol=1e-4), (
        f"max abs diff {jnp.max(jnp.abs(out_big - ref_big))}")

    print("KERNEL_OK")
</pallas_src>

<mosaic_0001>
module attributes {stable_mosaic.version = 11 : i64} {
  func.func @mlp_kernel(%arg0: i32, %arg1: memref<128x16xf32, #tpu.memory_space<vmem>>, %arg2: memref<16x256xf32, #tpu.memory_space<vmem>>, %arg3: memref<1x256xf32, #tpu.memory_space<vmem>>, %arg4: memref<256x128xf32, #tpu.memory_space<vmem>>, %arg5: memref<1x128xf32, #tpu.memory_space<vmem>>, %arg6: memref<128x64xf32, #tpu.memory_space<vmem>>, %arg7: memref<1x64xf32, #tpu.memory_space<vmem>>, %arg8: memref<64x32xf32, #tpu.memory_space<vmem>>, %arg9: memref<1x32xf32, #tpu.memory_space<vmem>>, %arg10: memref<1x32xf32, #tpu.memory_space<vmem>>, %arg11: memref<1x1xf32, #tpu.memory_space<vmem>>, %arg12: memref<1x128xf32, #tpu.memory_space<vmem>>) attributes {dimension_semantics = [#tpu.dimension_semantics<parallel>], iteration_bounds = array<i64: 1>, scalar_prefetch = 0 : i64, scratch_operands = 0 : i64, tpu.core_type = #tpu.core_type<tc>, window_params = [{transform_indices = @transform_0, window_bounds = array<i64: 128, 16>}, {pipeline_mode = #tpu.pipeline_mode<synchronous>, transform_indices = @transform_1, window_bounds = array<i64: 16, 256>}, {pipeline_mode = #tpu.pipeline_mode<synchronous>, transform_indices = @transform_2, window_bounds = array<i64: 1, 256>}, {pipeline_mode = #tpu.pipeline_mode<synchronous>, transform_indices = @transform_3, window_bounds = array<i64: 256, 128>}, {pipeline_mode = #tpu.pipeline_mode<synchronous>, transform_indices = @transform_4, window_bounds = array<i64: 1, 128>}, {pipeline_mode = #tpu.pipeline_mode<synchronous>, transform_indices = @transform_5, window_bounds = array<i64: 128, 64>}, {pipeline_mode = #tpu.pipeline_mode<synchronous>, transform_indices = @transform_6, window_bounds = array<i64: 1, 64>}, {pipeline_mode = #tpu.pipeline_mode<synchronous>, transform_indices = @transform_7, window_bounds = array<i64: 64, 32>}, {pipeline_mode = #tpu.pipeline_mode<synchronous>, transform_indices = @transform_8, window_bounds = array<i64: 1, 32>}, {pipeline_mode = #tpu.pipeline_mode<synchronous>, transform_indices = @transform_9, window_bounds = array<i64: 1, 32>}, {pipeline_mode = #tpu.pipeline_mode<synchronous>, transform_indices = @transform_10, window_bounds = array<i64: 1, 1>}, {transform_indices = @transform_11, window_bounds = array<i64: 1, 128>}]} {
    %c0 = arith.constant 0 : index
    %c0_0 = arith.constant 0 : index
    %0 = vector.load %arg1[%c0, %c0_0] : memref<128x16xf32, #tpu.memory_space<vmem>>, vector<128x16xf32>
    %c0_1 = arith.constant 0 : index
    %c0_2 = arith.constant 0 : index
    %1 = vector.load %arg2[%c0_1, %c0_2] : memref<16x256xf32, #tpu.memory_space<vmem>>, vector<16x256xf32>
    %cst = arith.constant dense<0.000000e+00> : vector<128x256xf32>
    %2 = tpu.matmul %0, %1, %cst {dimension_numbers = #tpu.dot_dimension_numbers<[1], [0], [0], [1], [0, 0, 1, 1], [], []>} : vector<128x16xf32>, vector<16x256xf32>, vector<128x256xf32> -> vector<128x256xf32>
    %c0_3 = arith.constant 0 : index
    %c0_4 = arith.constant 0 : index
    %3 = vector.load %arg3[%c0_3, %c0_4] : memref<1x256xf32, #tpu.memory_space<vmem>>, vector<1x256xf32>
    %4 = vector.broadcast %3 : vector<1x256xf32> to vector<128x256xf32>
    %5 = arith.addf %2, %4 : vector<128x256xf32>
    %6 = math.tanh %5 : vector<128x256xf32>
    %c0_5 = arith.constant 0 : index
    %c0_6 = arith.constant 0 : index
    %7 = vector.load %arg4[%c0_5, %c0_6] : memref<256x128xf32, #tpu.memory_space<vmem>>, vector<256x128xf32>
    %cst_7 = arith.constant dense<0.000000e+00> : vector<128x128xf32>
    %8 = tpu.matmul %6, %7, %cst_7 {dimension_numbers = #tpu.dot_dimension_numbers<[1], [0], [0], [1], [0, 0, 1, 1], [], []>} : vector<128x256xf32>, vector<256x128xf32>, vector<128x128xf32> -> vector<128x128xf32>
    %c0_8 = arith.constant 0 : index
    %c0_9 = arith.constant 0 : index
    %9 = vector.load %arg5[%c0_8, %c0_9] : memref<1x128xf32, #tpu.memory_space<vmem>>, vector<1x128xf32>
    %10 = vector.broadcast %9 : vector<1x128xf32> to vector<128x128xf32>
    %11 = arith.addf %8, %10 : vector<128x128xf32>
    %12 = math.tanh %11 : vector<128x128xf32>
    %c0_10 = arith.constant 0 : index
    %c0_11 = arith.constant 0 : index
    %13 = vector.load %arg6[%c0_10, %c0_11] : memref<128x64xf32, #tpu.memory_space<vmem>>, vector<128x64xf32>
    %cst_12 = arith.constant dense<0.000000e+00> : vector<128x64xf32>
    %14 = tpu.matmul %12, %13, %cst_12 {dimension_numbers = #tpu.dot_dimension_numbers<[1], [0], [0], [1], [0, 0, 1, 1], [], []>} : vector<128x128xf32>, vector<128x64xf32>, vector<128x64xf32> -> vector<128x64xf32>
    %c0_13 = arith.constant 0 : index
    %c0_14 = arith.constant 0 : index
    %15 = vector.load %arg7[%c0_13, %c0_14] : memref<1x64xf32, #tpu.memory_space<vmem>>, vector<1x64xf32>
    %16 = vector.broadcast %15 : vector<1x64xf32> to vector<128x64xf32>
    %17 = arith.addf %14, %16 : vector<128x64xf32>
    %18 = math.tanh %17 : vector<128x64xf32>
    %c0_15 = arith.constant 0 : index
    %c0_16 = arith.constant 0 : index
    %19 = vector.load %arg8[%c0_15, %c0_16] : memref<64x32xf32, #tpu.memory_space<vmem>>, vector<64x32xf32>
    %cst_17 = arith.constant dense<0.000000e+00> : vector<128x32xf32>
    %20 = tpu.matmul %18, %19, %cst_17 {dimension_numbers = #tpu.dot_dimension_numbers<[1], [0], [0], [1], [0, 0, 1, 1], [], []>} : vector<128x64xf32>, vector<64x32xf32>, vector<128x32xf32> -> vector<128x32xf32>
    %c0_18 = arith.constant 0 : index
    %c0_19 = arith.constant 0 : index
    %21 = vector.load %arg9[%c0_18, %c0_19] : memref<1x32xf32, #tpu.memory_space<vmem>>, vector<1x32xf32>
    %22 = vector.broadcast %21 : vector<1x32xf32> to vector<128x32xf32>
    %23 = arith.addf %20, %22 : vector<128x32xf32>
    %24 = math.tanh %23 : vector<128x32xf32>
    %c0_20 = arith.constant 0 : index
    %c0_21 = arith.constant 0 : index
    %25 = vector.load %arg10[%c0_20, %c0_21] : memref<1x32xf32, #tpu.memory_space<vmem>>, vector<1x32xf32>
    %cst_22 = arith.constant dense<0.000000e+00> : vector<1x128xf32>
    %26 = tpu.matmul %25, %24, %cst_22 {dimension_numbers = #tpu.dot_dimension_numbers<[1], [1], [0], [0], [0, 0, 1, 0], [], []>} : vector<1x32xf32>, vector<128x32xf32>, vector<1x128xf32> -> vector<1x128xf32>
    %c0_23 = arith.constant 0 : index
    %c0_24 = arith.constant 0 : index
    %27 = vector.load %arg11[%c0_23, %c0_24] : memref<1x1xf32, #tpu.memory_space<vmem>>, vector<1x1xf32>
    %28 = vector.broadcast %27 : vector<1x1xf32> to vector<1x128xf32>
    %29 = arith.addf %26, %28 : vector<1x128xf32>
    %c0_25 = arith.constant 0 : index
    %c0_26 = arith.constant 0 : index
    %30 = vector.load %arg12[%c0_25, %c0_26] : memref<1x128xf32, #tpu.memory_space<vmem>>, vector<1x128xf32>
    tpu.vector_store %arg12[%c0_25, %c0_26], %29 {strides = array<i32>} : memref<1x128xf32, #tpu.memory_space<vmem>>, vector<1x128xf32>,
    return
  }
  func.func @transform_0(%arg0: i32) -> (i32, i32) {
    %c0_i32 = arith.constant 0 : i32
    %c0_i32_0 = arith.constant 0 : i32
    return %arg0, %c0_i32 : i32, i32
  }
  func.func @transform_1(%arg0: i32) -> (i32, i32) {
    %c0_i32 = arith.constant 0 : i32
    %c0_i32_0 = arith.constant 0 : i32
    %c0_i32_1 = arith.constant 0 : i32
    return %c0_i32, %c0_i32_0 : i32, i32
  }
  func.func @transform_2(%arg0: i32) -> (i32, i32) {
    %c0_i32 = arith.constant 0 : i32
    %c0_i32_0 = arith.constant 0 : i32
    %c0_i32_1 = arith.constant 0 : i32
    return %c0_i32, %c0_i32_0 : i32, i32
  }
  func.func @transform_3(%arg0: i32) -> (i32, i32) {
    %c0_i32 = arith.constant 0 : i32
    %c0_i32_0 = arith.constant 0 : i32
    %c0_i32_1 = arith.constant 0 : i32
    return %c0_i32, %c0_i32_0 : i32, i32
  }
  func.func @transform_4(%arg0: i32) -> (i32, i32) {
    %c0_i32 = arith.constant 0 : i32
    %c0_i32_0 = arith.constant 0 : i32
    %c0_i32_1 = arith.constant 0 : i32
    return %c0_i32, %c0_i32_0 : i32, i32
  }
  func.func @transform_5(%arg0: i32) -> (i32, i32) {
    %c0_i32 = arith.constant 0 : i32
    %c0_i32_0 = arith.constant 0 : i32
    %c0_i32_1 = arith.constant 0 : i32
    return %c0_i32, %c0_i32_0 : i32, i32
  }
  func.func @transform_6(%arg0: i32) -> (i32, i32) {
    %c0_i32 = arith.constant 0 : i32
    %c0_i32_0 = arith.constant 0 : i32
    %c0_i32_1 = arith.constant 0 : i32
    return %c0_i32, %c0_i32_0 : i32, i32
  }
  func.func @transform_7(%arg0: i32) -> (i32, i32) {
    %c0_i32 = arith.constant 0 : i32
    %c0_i32_0 = arith.constant 0 : i32
    %c0_i32_1 = arith.constant 0 : i32
    return %c0_i32, %c0_i32_0 : i32, i32
  }
  func.func @transform_8(%arg0: i32) -> (i32, i32) {
    %c0_i32 = arith.constant 0 : i32
    %c0_i32_0 = arith.constant 0 : i32
    %c0_i32_1 = arith.constant 0 : i32
    return %c0_i32, %c0_i32_0 : i32, i32
  }
  func.func @transform_9(%arg0: i32) -> (i32, i32) {
    %c0_i32 = arith.constant 0 : i32
    %c0_i32_0 = arith.constant 0 : i32
    %c0_i32_1 = arith.constant 0 : i32
    return %c0_i32, %c0_i32_0 : i32, i32
  }
  func.func @transform_10(%arg0: i32) -> (i32, i32) {
    %c0_i32 = arith.constant 0 : i32
    %c0_i32_0 = arith.constant 0 : i32
    %c0_i32_1 = arith.constant 0 : i32
    return %c0_i32, %c0_i32_0 : i32, i32
  }
  func.func @transform_11(%arg0: i32) -> (i32, i32) {
    %c0_i32 = arith.constant 0 : i32
    %c0_i32_0 = arith.constant 0 : i32
    return %c0_i32, %arg0 : i32, i32
  }
}

</mosaic_0001>

<llo_original>
// kernel: mlp_forward.1
$region0: #{mlp_forward.1}
  #allocation0 [shape = 'u32[]', space=smem, size = 0x4, offset = 0x4, fixed_abs, tag = 'smem constant byte address 0x4 - core index']
  #allocation1 [shape = 'u32[72,128]{1,0:T(1,128)}', space=vmem, size = 0x9000, scoped, tag = 'internal scratch']
  #allocation2 [shape = 'f32[1,1]{1,0:T(1,128)S(1)}', space=vmem, size = 0x200, scoped, tag = 'scoped memory for mlp_forward.1']
  %s0 = inlined_call_operand.vmem [shape: f32[128,16], index: 0, kind: input, shape index: {}]
  %s1 = inlined_call_operand.vmem [shape: f32[16,256], index: 1, kind: input, shape index: {}]
  %s2 = inlined_call_operand.vmem [shape: f32[1,256], index: 2, kind: input, shape index: {}]
  %s3 = inlined_call_operand.vmem [shape: f32[256,128], index: 3, kind: input, shape index: {}]
  %s4 = inlined_call_operand.vmem [shape: f32[1,128], index: 4, kind: input, shape index: {}]
  %s5 = inlined_call_operand.vmem [shape: f32[128,64], index: 5, kind: input, shape index: {}]
  %s6 = inlined_call_operand.vmem [shape: f32[1,64], index: 6, kind: input, shape index: {}]
  %s7 = inlined_call_operand.vmem [shape: f32[64,32], index: 7, kind: input, shape index: {}]
  %s8 = inlined_call_operand.vmem [shape: f32[1,32], index: 8, kind: input, shape index: {}]
  %s9 = inlined_call_operand.vmem [shape: f32[1,32], index: 9, kind: input, shape index: {}]
  %s10 = inlined_call_operand.<no memory space> [shape: f32[1,1], index: 10, kind: input, shape index: {}]
  %s11 = inlined_call_operand.vmem [shape: f32[1,128], index: 11, kind: output, shape index: {}]
  %s12 = sld [smem:[#allocation0]]
  $region54: #{mlp_forward.1} parent=0
    _
  %s14 = ssub.s32 1, %s12
  %s15 = scalar_select 0, %s14, %s12
  %v16 = vstv %s10
  %17 = vst [vmem:[#allocation2] sm:$0x1] %v16
  // Predicated region
  $region2: #{mlp_forward.1} parent=0 // pred_check
    _
  $region3: #{mlp_forward.1} parent=0 // pred_check_branch
    %19 = sbr.rel (0) target = $region5
  $region4: #{mlp_forward.1} parent=0 // pred_region
    _
  $region5: #{mlp_forward.1} parent=0 // pred_fallthru
    _
  // Predicated region
  $region6: #{mlp_forward.1} parent=0 // pred_check
    _
  $region7: #{mlp_forward.1} parent=0 // pred_check_branch
    %21 = sbr.rel (0) target = $region9
  $region8: #{mlp_forward.1} parent=0 // pred_region
    _
  $region9: #{mlp_forward.1} parent=0 // pred_fallthru
    _
  // Predicated region
  $region10: #{mlp_forward.1} parent=0 // pred_check
    _
  $region11: #{mlp_forward.1} parent=0 // pred_check_branch
    %23 = sbr.rel (0) target = $region13
  $region12: #{mlp_forward.1} parent=0 // pred_region
    _
  $region13: #{mlp_forward.1} parent=0 // pred_fallthru
    _
  // Predicated region
  $region14: #{mlp_forward.1} parent=0 // pred_check
    _
  $region15: #{mlp_forward.1} parent=0 // pred_check_branch
    %25 = sbr.rel (0) target = $region17
  $region16: #{mlp_forward.1} parent=0 // pred_region
    _
  $region17: #{mlp_forward.1} parent=0 // pred_fallthru
    _
  // Predicated region
  $region18: #{mlp_forward.1} parent=0 // pred_check
    _
  $region19: #{mlp_forward.1} parent=0 // pred_check_branch
    %27 = sbr.rel (0) target = $region21
  $region20: #{mlp_forward.1} parent=0 // pred_region
    _
  $region21: #{mlp_forward.1} parent=0 // pred_fallthru
    _
  // Predicated region
  $region22: #{mlp_forward.1} parent=0 // pred_check
    _
  $region23: #{mlp_forward.1} parent=0 // pred_check_branch
    %29 = sbr.rel (0) target = $region25
  $region24: #{mlp_forward.1} parent=0 // pred_region
    _
  $region25: #{mlp_forward.1} parent=0 // pred_fallthru
    _
  // Predicated region
  $region26: #{mlp_forward.1} parent=0 // pred_check
    _
  $region27: #{mlp_forward.1} parent=0 // pred_check_branch
    %31 = sbr.rel (0) target = $region29
  $region28: #{mlp_forward.1} parent=0 // pred_region
    _
  $region29: #{mlp_forward.1} parent=0 // pred_fallthru
    _
  // Predicated region
  $region30: #{mlp_forward.1} parent=0 // pred_check
    _
  $region31: #{mlp_forward.1} parent=0 // pred_check_branch
    %33 = sbr.rel (0) target = $region33
  $region32: #{mlp_forward.1} parent=0 // pred_region
    _
  $region33: #{mlp_forward.1} parent=0 // pred_fallthru
    _
  // Predicated region
  $region34: #{mlp_forward.1} parent=0 // pred_check
    _
  $region35: #{mlp_forward.1} parent=0 // pred_check_branch
    %35 = sbr.rel (0) target = $region37
  $region36: #{mlp_forward.1} parent=0 // pred_region
    _
  $region37: #{mlp_forward.1} parent=0 // pred_fallthru
    _
  // Predicated region
  $region38: #{mlp_forward.1} parent=0 // pred_check
    _
  $region39: #{mlp_forward.1} parent=0 // pred_check_branch
    %37 = sbr.rel (0) target = $region41
  $region40: #{mlp_forward.1} parent=0 // pred_region
    _
  $region41: #{mlp_forward.1} parent=0 // pred_fallthru
    _
  // Predicated region
  $region42: #{mlp_forward.1} parent=0 // pred_check
    _
  $region43: #{mlp_forward.1} parent=0 // pred_check_branch
    %39 = sbr.rel (0) target = $region45
  $region44: #{mlp_forward.1} parent=0 // pred_region
    _
  $region45: #{mlp_forward.1} parent=0 // pred_fallthru
    _
  %v40 = vld [vmem:[%s0] sm:$0xff]
  %v41 = vld [vmem:[%s0 + $0x8] sm:$0xff]
  %v42 = vld [vmem:[%s0 + $0x10] sm:$0xff]
  %v43 = vld [vmem:[%s0 + $0x18] sm:$0xff]
  %v44 = vld [vmem:[%s0 + $0x20] sm:$0xff]
  %v45 = vld [vmem:[%s0 + $0x28] sm:$0xff]
  %v46 = vld [vmem:[%s0 + $0x30] sm:$0xff]
  %v47 = vld [vmem:[%s0 + $0x38] sm:$0xff]
  %v48 = vld [vmem:[%s0 + $0x40] sm:$0xff]
  %v49 = vld [vmem:[%s0 + $0x48] sm:$0xff]
  %v50 = vld [vmem:[%s0 + $0x50] sm:$0xff]
  %v51 = vld [vmem:[%s0 + $0x58] sm:$0xff]
  %v52 = vld [vmem:[%s0 + $0x60] sm:$0xff]
  %v53 = vld [vmem:[%s0 + $0x68] sm:$0xff]
  %v54 = vld [vmem:[%s0 + $0x70] sm:$0xff]
  %v55 = vld [vmem:[%s0 + $0x78] sm:$0xff]
  %v56 = vld [vmem:[%s1] sm:$0xff]
  %v57 = vld [vmem:[%s1 + $0x8] sm:$0xff]
  %v58 = vld [vmem:[%s1 + $0x10] sm:$0xff]
  %v59 = vld [vmem:[%s1 + $0x18] sm:$0xff]
  %v60 = vld [vmem:[%s2] sm:$0x3]
  %v62 = vperm.slane %v60, 0
  %v63 = vperm.slane %v60, 1
  %vm66 = vcmask 130048
  %v68 = vsel %vm66, %v40, 0
  %v71 = vsel %vm66, %v41, 0
  %v74 = vsel %vm66, %v42, 0
  %v77 = vsel %vm66, %v43, 0
  %v80 = vsel %vm66, %v44, 0
  %v83 = vsel %vm66, %v45, 0
  %v86 = vsel %vm66, %v46, 0
  %v89 = vsel %vm66, %v47, 0
  %v92 = vsel %vm66, %v48, 0
  %v95 = vsel %vm66, %v49, 0
  %v98 = vsel %vm66, %v50, 0
  %v101 = vsel %vm66, %v51, 0
  %v104 = vsel %vm66, %v52, 0
  %v107 = vsel %vm66, %v53, 0
  %v110 = vsel %vm66, %v54, 0
  %v113 = vsel %vm66, %v55, 0
  %115 = vmatpush.msra.mxu0 0.0
  %116 = vmatpush.msra.mxu0 0.0
  %117 = vmatpush.msra.mxu0 0.0
  %118 = vmatpush.msra.mxu0 0.0
  %119 = vmatpush.msra.mxu0 0.0
  %120 = vmatpush.msra.mxu0 0.0
  %121 = vmatpush.msra.mxu0 0.0
  %122 = vmatpush.msra.mxu0 0.0
  %123 = vmatpush.msra.mxu0 0.0
  %124 = vmatpush.msra.mxu0 0.0
  %125 = vmatpush.msra.mxu0 0.0
  %126 = vmatpush.msra.mxu0 0.0
  %127 = vmatpush.msra.mxu0 0.0
  %128 = vmatpush.msra.mxu0 0.0
  %129 = vmatpush.msra.mxu0 %v58
  %130 = vmatpush.msra.mxu0 %v56
  %131 = vmatmul.f32.gmra.mxu0 %v68
  %v132 = vpop.f32.mrf.mxu0
  %v133 = vadd.f32 %v62, %v132
  %134 = vmatmul.f32.gmra.mxu0 %v71
  %v135 = vpop.f32.mrf.mxu0
  %v136 = vadd.f32 %v62, %v135
  %137 = vmatmul.f32.gmra.mxu0 %v74
  %v138 = vpop.f32.mrf.mxu0
  %v139 = vadd.f32 %v62, %v138
  %140 = vmatmul.f32.gmra.mxu0 %v77
  %v141 = vpop.f32.mrf.mxu0
  %v142 = vadd.f32 %v62, %v141
  %143 = vmatmul.f32.gmra.mxu0 %v80
  %v144 = vpop.f32.mrf.mxu0
  %v145 = vadd.f32 %v62, %v144
  %146 = vmatmul.f32.gmra.mxu0 %v83
  %v147 = vpop.f32.mrf.mxu0
  %v148 = vadd.f32 %v62, %v147
  %149 = vmatmul.f32.gmra.mxu0 %v86
  %v150 = vpop.f32.mrf.mxu0
  %v151 = vadd.f32 %v62, %v150
  %152 = vmatmul.f32.gmra.mxu0 %v89
  %v153 = vpop.f32.mrf.mxu0
  %v154 = vadd.f32 %v62, %v153
  %155 = vmatmul.f32.gmra.mxu0 %v92
  %v156 = vpop.f32.mrf.mxu0
  %v157 = vadd.f32 %v62, %v156
  %158 = vmatmul.f32.gmra.mxu0 %v95
  %v159 = vpop.f32.mrf.mxu0
  %v160 = vadd.f32 %v62, %v159
  %161 = vmatmul.f32.gmra.mxu0 %v98
  %v162 = vpop.f32.mrf.mxu0
  %v163 = vadd.f32 %v62, %v162
  %164 = vmatmul.f32.gmra.mxu0 %v101
  %v165 = vpop.f32.mrf.mxu0
  %v166 = vadd.f32 %v62, %v165
  %167 = vmatmul.f32.gmra.mxu0 %v104
  %v168 = vpop.f32.mrf.mxu0
  %v169 = vadd.f32 %v62, %v168
  %170 = vmatmul.f32.gmra.mxu0 %v107
  %v171 = vpop.f32.mrf.mxu0
  %v172 = vadd.f32 %v62, %v171
  %173 = vmatmul.f32.gmra.mxu0 %v110
  %v174 = vpop.f32.mrf.mxu0
  %v175 = vadd.f32 %v62, %v174
  %176 = vmatmul.f32.gmra.mxu0 %v113
  %v177 = vpop.f32.mrf.mxu0
  %v178 = vadd.f32 %v62, %v177
  %179 = vdwg.mxu0
  %180 = vmatpush.msra.mxu0 0.0
  %181 = vmatpush.msra.mxu0 0.0
  %182 = vmatpush.msra.mxu0 0.0
  %183 = vmatpush.msra.mxu0 0.0
  %184 = vmatpush.msra.mxu0 0.0
  %185 = vmatpush.msra.mxu0 0.0
  %186 = vmatpush.msra.mxu0 0.0
  %187 = vmatpush.msra.mxu0 0.0
  %188 = vmatpush.msra.mxu0 0.0
  %189 = vmatpush.msra.mxu0 0.0
  %190 = vmatpush.msra.mxu0 0.0
  %191 = vmatpush.msra.mxu0 0.0
  %192 = vmatpush.msra.mxu0 0.0
  %193 = vmatpush.msra.mxu0 0.0
  %194 = vmatpush.msra.mxu0 %v59
  %195 = vmatpush.msra.mxu0 %v57
  %196 = vmatmul.f32.gmra.mxu0 %v68
  %v197 = vpop.f32.mrf.mxu0
  %v198 = vadd.f32 %v63, %v197
  %199 = vmatmul.f32.gmra.mxu0 %v71
  %v200 = vpop.f32.mrf.mxu0
  %v201 = vadd.f32 %v63, %v200
  %202 = vmatmul.f32.gmra.mxu0 %v74
  %v203 = vpop.f32.mrf.mxu0
  %v204 = vadd.f32 %v63, %v203
  %205 = vmatmul.f32.gmra.mxu0 %v77
  %v206 = vpop.f32.mrf.mxu0
  %v207 = vadd.f32 %v63, %v206
  %208 = vmatmul.f32.gmra.mxu0 %v80
  %v209 = vpop.f32.mrf.mxu0
  %v210 = vadd.f32 %v63, %v209
  %211 = vmatmul.f32.gmra.mxu0 %v83
  %v212 = vpop.f32.mrf.mxu0
  %v213 = vadd.f32 %v63, %v212
  %214 = vmatmul.f32.gmra.mxu0 %v86
  %v215 = vpop.f32.mrf.mxu0
  %v216 = vadd.f32 %v63, %v215
  %217 = vmatmul.f32.gmra.mxu0 %v89
  %v218 = vpop.f32.mrf.mxu0
  %v219 = vadd.f32 %v63, %v218
  %220 = vmatmul.f32.gmra.mxu0 %v92
  %v221 = vpop.f32.mrf.mxu0
  %v222 = vadd.f32 %v63, %v221
  %223 = vmatmul.f32.gmra.mxu0 %v95
  %v224 = vpop.f32.mrf.mxu0
  %v225 = vadd.f32 %v63, %v224
  %226 = vmatmul.f32.gmra.mxu0 %v98
  %v227 = vpop.f32.mrf.mxu0
  %v228 = vadd.f32 %v63, %v227
  %229 = vmatmul.f32.gmra.mxu0 %v101
  %v230 = vpop.f32.mrf.mxu0
  %v231 = vadd.f32 %v63, %v230
  %232 = vmatmul.f32.gmra.mxu0 %v104
  %v233 = vpop.f32.mrf.mxu0
  %v234 = vadd.f32 %v63, %v233
  %235 = vmatmul.f32.gmra.mxu0 %v107
  %v236 = vpop.f32.mrf.mxu0
  %v237 = vadd.f32 %v63, %v236
  %238 = vmatmul.f32.gmra.mxu0 %v110
  %v239 = vpop.f32.mrf.mxu0
  %v240 = vadd.f32 %v63, %v239
  %241 = vmatmul.f32.gmra.mxu0 %v113
  %v242 = vpop.f32.mrf.mxu0
  %v243 = vadd.f32 %v63, %v242
  %244 = vdwg.mxu0
  %v245 = vtanh.pop %v133
  %v246 = vtanh.pop %v198
  %v247 = vtanh.pop %v136
  %v248 = vtanh.pop %v201
  %v249 = vtanh.pop %v139
  %v250 = vtanh.pop %v204
  %v251 = vtanh.pop %v142
  %v252 = vtanh.pop %v207
  %v253 = vtanh.pop %v145
  %v254 = vtanh.pop %v210
  %v255 = vtanh.pop %v148
  %v256 = vtanh.pop %v213
  %v257 = vtanh.pop %v151
  %v258 = vtanh.pop %v216
  %v259 = vtanh.pop %v154
  %v260 = vtanh.pop %v219
  %v261 = vtanh.pop %v157
  %v262 = vtanh.pop %v222
  %v263 = vtanh.pop %v160
  %v264 = vtanh.pop %v225
  %v265 = vtanh.pop %v163
  %v266 = vtanh.pop %v228
  %v267 = vtanh.pop %v166
  %v268 = vtanh.pop %v231
  %v269 = vtanh.pop %v169
  %v270 = vtanh.pop %v234
  %v271 = vtanh.pop %v172
  %v272 = vtanh.pop %v237
  %v273 = vtanh.pop %v175
  %v274 = vtanh.pop %v240
  %v275 = vtanh.pop %v178
  %v276 = vtanh.pop %v243
  %v277 = vld [vmem:[%s3] sm:$0xff]
  %v278 = vld [vmem:[%s3 + $0x8] sm:$0xff]
  %v279 = vld [vmem:[%s3 + $0x10] sm:$0xff]
  %v280 = vld [vmem:[%s3 + $0x18] sm:$0xff]
  %v281 = vld [vmem:[%s3 + $0x20] sm:$0xff]
  %v282 = vld [vmem:[%s3 + $0x28] sm:$0xff]
  %v283 = vld [vmem:[%s3 + $0x30] sm:$0xff]
  %v284 = vld [vmem:[%s3 + $0x38] sm:$0xff]
  %v285 = vld [vmem:[%s3 + $0x40] sm:$0xff]
  %v286 = vld [vmem:[%s3 + $0x48] sm:$0xff]
  %v287 = vld [vmem:[%s3 + $0x50] sm:$0xff]
  %v288 = vld [vmem:[%s3 + $0x58] sm:$0xff]
  %v289 = vld [vmem:[%s3 + $0x60] sm:$0xff]
  %v290 = vld [vmem:[%s3 + $0x68] sm:$0xff]
  %v291 = vld [vmem:[%s3 + $0x70] sm:$0xff]
  %v292 = vld [vmem:[%s3 + $0x78] sm:$0xff]
  %v293 = vld [vmem:[%s3 + $0x80] sm:$0xff]
  %v294 = vld [vmem:[%s3 + $0x88] sm:$0xff]
  %v295 = vld [vmem:[%s3 + $0x90] sm:$0xff]
  %v296 = vld [vmem:[%s3 + $0x98] sm:$0xff]
  %v297 = vld [vmem:[%s3 + $0xa0] sm:$0xff]
  %v298 = vld [vmem:[%s3 + $0xa8] sm:$0xff]
  %v299 = vld [vmem:[%s3 + $0xb0] sm:$0xff]
  %v300 = vld [vmem:[%s3 + $0xb8] sm:$0xff]
  %v301 = vld [vmem:[%s3 + $0xc0] sm:$0xff]
  %v302 = vld [vmem:[%s3 + $0xc8] sm:$0xff]
  %v303 = vld [vmem:[%s3 + $0xd0] sm:$0xff]
  %v304 = vld [vmem:[%s3 + $0xd8] sm:$0xff]
  %v305 = vld [vmem:[%s3 + $0xe0] sm:$0xff]
  %v306 = vld [vmem:[%s3 + $0xe8] sm:$0xff]
  %v307 = vld [vmem:[%s3 + $0xf0] sm:$0xff]
  %v308 = vld [vmem:[%s3 + $0xf8] sm:$0xff]
  %v309 = vld [vmem:[%s4] sm:$0x1]
  %v311 = vperm.slane %v309, 0
  %313 = vmatpush.msra.mxu0 %v292
  %314 = vmatpush.msra.mxu0 %v291
  %315 = vmatpush.msra.mxu0 %v290
  %316 = vmatpush.msra.mxu0 %v289
  %317 = vmatpush.msra.mxu0 %v288
  %318 = vmatpush.msra.mxu0 %v287
  %319 = vmatpush.msra.mxu0 %v286
  %320 = vmatpush.msra.mxu0 %v285
  %321 = vmatpush.msra.mxu0 %v284
  %322 = vmatpush.msra.mxu0 %v283
  %323 = vmatpush.msra.mxu0 %v282
  %324 = vmatpush.msra.mxu0 %v281
  %325 = vmatpush.msra.mxu0 %v280
  %326 = vmatpush.msra.mxu0 %v279
  %327 = vmatpush.msra.mxu0 %v278
  %328 = vmatpush.msra.mxu0 %v277
  %329 = vmatmul.f32.gmra.mxu0 %v245
  %v330 = vpop.f32.mrf.mxu0
  %v331 = vadd.f32 %v311, %v330
  %332 = vmatmul.f32.gmra.mxu0 %v247
  %v333 = vpop.f32.mrf.mxu0
  %v334 = vadd.f32 %v311, %v333
  %335 = vmatmul.f32.gmra.mxu0 %v249
  %v336 = vpop.f32.mrf.mxu0
  %v337 = vadd.f32 %v311, %v336
  %338 = vmatmul.f32.gmra.mxu0 %v251
  %v339 = vpop.f32.mrf.mxu0
  %v340 = vadd.f32 %v311, %v339
  %341 = vmatmul.f32.gmra.mxu0 %v253
  %v342 = vpop.f32.mrf.mxu0
  %v343 = vadd.f32 %v311, %v342
  %344 = vmatmul.f32.gmra.mxu0 %v255
  %v345 = vpop.f32.mrf.mxu0
  %v346 = vadd.f32 %v311, %v345
  %347 = vmatmul.f32.gmra.mxu0 %v257
  %v348 = vpop.f32.mrf.mxu0
  %v349 = vadd.f32 %v311, %v348
  %350 = vmatmul.f32.gmra.mxu0 %v259
  %v351 = vpop.f32.mrf.mxu0
  %v352 = vadd.f32 %v311, %v351
  %353 = vmatmul.f32.gmra.mxu0 %v261
  %v354 = vpop.f32.mrf.mxu0
  %v355 = vadd.f32 %v311, %v354
  %356 = vmatmul.f32.gmra.mxu0 %v263
  %v357 = vpop.f32.mrf.mxu0
  %v358 = vadd.f32 %v311, %v357
  %359 = vmatmul.f32.gmra.mxu0 %v265
  %v360 = vpop.f32.mrf.mxu0
  %v361 = vadd.f32 %v311, %v360
  %362 = vmatmul.f32.gmra.mxu0 %v267
  %v363 = vpop.f32.mrf.mxu0
  %v364 = vadd.f32 %v311, %v363
  %365 = vmatmul.f32.gmra.mxu0 %v269
  %v366 = vpop.f32.mrf.mxu0
  %v367 = vadd.f32 %v311, %v366
  %368 = vmatmul.f32.gmra.mxu0 %v271
  %v369 = vpop.f32.mrf.mxu0
  %v370 = vadd.f32 %v311, %v369
  %371 = vmatmul.f32.gmra.mxu0 %v273
  %v372 = vpop.f32.mrf.mxu0
  %v373 = vadd.f32 %v311, %v372
  %374 = vmatmul.f32.gmra.mxu0 %v275
  %v375 = vpop.f32.mrf.mxu0
  %v376 = vadd.f32 %v311, %v375
  %377 = vdwg.mxu0
  %378 = vmatpush.msra.mxu0 %v308
  %379 = vmatpush.msra.mxu0 %v307
  %380 = vmatpush.msra.mxu0 %v306
  %381 = vmatpush.msra.mxu0 %v305
  %382 = vmatpush.msra.mxu0 %v304
  %383 = vmatpush.msra.mxu0 %v303
  %384 = vmatpush.msra.mxu0 %v302
  %385 = vmatpush.msra.mxu0 %v301
  %386 = vmatpush.msra.mxu0 %v300
  %387 = vmatpush.msra.mxu0 %v299
  %388 = vmatpush.msra.mxu0 %v298
  %389 = vmatpush.msra.mxu0 %v297
  %390 = vmatpush.msra.mxu0 %v296
  %391 = vmatpush.msra.mxu0 %v295
  %392 = vmatpush.msra.mxu0 %v294
  %393 = vmatpush.msra.mxu0 %v293
  %394 = vmatmul.f32.gmra.mxu0 %v246
  %v395 = vpop.f32.mrf.mxu0
  %v396 = vadd.f32 %v331, %v395
  %397 = vmatmul.f32.gmra.mxu0 %v248
  %v398 = vpop.f32.mrf.mxu0
  %v399 = vadd.f32 %v334, %v398
  %400 = vmatmul.f32.gmra.mxu0 %v250
  %v401 = vpop.f32.mrf.mxu0
  %v402 = vadd.f32 %v337, %v401
  %403 = vmatmul.f32.gmra.mxu0 %v252
  %v404 = vpop.f32.mrf.mxu0
  %v405 = vadd.f32 %v340, %v404
  %406 = vmatmul.f32.gmra.mxu0 %v254
  %v407 = vpop.f32.mrf.mxu0
  %v408 = vadd.f32 %v343, %v407
  %409 = vmatmul.f32.gmra.mxu0 %v256
  %v410 = vpop.f32.mrf.mxu0
  %v411 = vadd.f32 %v346, %v410
  %412 = vmatmul.f32.gmra.mxu0 %v258
  %v413 = vpop.f32.mrf.mxu0
  %v414 = vadd.f32 %v349, %v413
  %415 = vmatmul.f32.gmra.mxu0 %v260
  %v416 = vpop.f32.mrf.mxu0
  %v417 = vadd.f32 %v352, %v416
  %418 = vmatmul.f32.gmra.mxu0 %v262
  %v419 = vpop.f32.mrf.mxu0
  %v420 = vadd.f32 %v355, %v419
  %421 = vmatmul.f32.gmra.mxu0 %v264
  %v422 = vpop.f32.mrf.mxu0
  %v423 = vadd.f32 %v358, %v422
  %424 = vmatmul.f32.gmra.mxu0 %v266
  %v425 = vpop.f32.mrf.mxu0
  %v426 = vadd.f32 %v361, %v425
  %427 = vmatmul.f32.gmra.mxu0 %v268
  %v428 = vpop.f32.mrf.mxu0
  %v429 = vadd.f32 %v364, %v428
  %430 = vmatmul.f32.gmra.mxu0 %v270
  %v431 = vpop.f32.mrf.mxu0
  %v432 = vadd.f32 %v367, %v431
  %433 = vmatmul.f32.gmra.mxu0 %v272
  %v434 = vpop.f32.mrf.mxu0
  %v435 = vadd.f32 %v370, %v434
  %436 = vmatmul.f32.gmra.mxu0 %v274
  %v437 = vpop.f32.mrf.mxu0
  %v438 = vadd.f32 %v373, %v437
  %439 = vmatmul.f32.gmra.mxu0 %v276
  %v440 = vpop.f32.mrf.mxu0
  %v441 = vadd.f32 %v376, %v440
  %442 = vdwg.mxu0
  %v443 = vtanh.pop %v396
  %v444 = vtanh.pop %v399
  %v445 = vtanh.pop %v402
  %v446 = vtanh.pop %v405
  %v447 = vtanh.pop %v408
  %v448 = vtanh.pop %v411
  %v449 = vtanh.pop %v414
  %v450 = vtanh.pop %v417
  %v451 = vtanh.pop %v420
  %v452 = vtanh.pop %v423
  %v453 = vtanh.pop %v426
  %v454 = vtanh.pop %v429
  %v455 = vtanh.pop %v432
  %v456 = vtanh.pop %v435
  %v457 = vtanh.pop %v438
  %v458 = vtanh.pop %v441
  %v459 = vld [vmem:[%s5] sm:$0xff]
  %v460 = vld [vmem:[%s5 + $0x8] sm:$0xff]
  %v461 = vld [vmem:[%s5 + $0x10] sm:$0xff]
  %v462 = vld [vmem:[%s5 + $0x18] sm:$0xff]
  %v463 = vld [vmem:[%s5 + $0x20] sm:$0xff]
  %v464 = vld [vmem:[%s5 + $0x28] sm:$0xff]
  %v465 = vld [vmem:[%s5 + $0x30] sm:$0xff]
  %v466 = vld [vmem:[%s5 + $0x38] sm:$0xff]
  %v467 = vld [vmem:[%s5 + $0x40] sm:$0xff]
  %v468 = vld [vmem:[%s5 + $0x48] sm:$0xff]
  %v469 = vld [vmem:[%s5 + $0x50] sm:$0xff]
  %v470 = vld [vmem:[%s5 + $0x58] sm:$0xff]
  %v471 = vld [vmem:[%s5 + $0x60] sm:$0xff]
  %v472 = vld [vmem:[%s5 + $0x68] sm:$0xff]
  %v473 = vld [vmem:[%s5 + $0x70] sm:$0xff]
  %v474 = vld [vmem:[%s5 + $0x78] sm:$0xff]
  %v475 = vld [vmem:[%s6] sm:$0x1]
  %v477 = vperm.slane %v475, 0
  %479 = vmatpush.msra.mxu0 %v474
  %480 = vmatpush.msra.mxu0 %v473
  %481 = vmatpush.msra.mxu0 %v472
  %482 = vmatpush.msra.mxu0 %v471
  %483 = vmatpush.msra.mxu0 %v470
  %484 = vmatpush.msra.mxu0 %v469
  %485 = vmatpush.msra.mxu0 %v468
  %486 = vmatpush.msra.mxu0 %v467
  %487 = vmatpush.msra.mxu0 %v466
  %488 = vmatpush.msra.mxu0 %v465
  %489 = vmatpush.msra.mxu0 %v464
  %490 = vmatpush.msra.mxu0 %v463
  %491 = vmatpush.msra.mxu0 %v462
  %492 = vmatpush.msra.mxu0 %v461
  %493 = vmatpush.msra.mxu0 %v460
  %494 = vmatpush.msra.mxu0 %v459
  %495 = vmatmul.f32.gmra.mxu0 %v443
  %v496 = vpop.f32.mrf.mxu0
  %v497 = vadd.f32 %v477, %v496
  %498 = vmatmul.f32.gmra.mxu0 %v444
  %v499 = vpop.f32.mrf.mxu0
  %v500 = vadd.f32 %v477, %v499
  %501 = vmatmul.f32.gmra.mxu0 %v445
  %v502 = vpop.f32.mrf.mxu0
  %v503 = vadd.f32 %v477, %v502
  %504 = vmatmul.f32.gmra.mxu0 %v446
  %v505 = vpop.f32.mrf.mxu0
  %v506 = vadd.f32 %v477, %v505
  %507 = vmatmul.f32.gmra.mxu0 %v447
  %v508 = vpop.f32.mrf.mxu0
  %v509 = vadd.f32 %v477, %v508
  %510 = vmatmul.f32.gmra.mxu0 %v448
  %v511 = vpop.f32.mrf.mxu0
  %v512 = vadd.f32 %v477, %v511
  %513 = vmatmul.f32.gmra.mxu0 %v449
  %v514 = vpop.f32.mrf.mxu0
  %v515 = vadd.f32 %v477, %v514
  %516 = vmatmul.f32.gmra.mxu0 %v450
  %v517 = vpop.f32.mrf.mxu0
  %v518 = vadd.f32 %v477, %v517
  %519 = vmatmul.f32.gmra.mxu0 %v451
  %v520 = vpop.f32.mrf.mxu0
  %v521 = vadd.f32 %v477, %v520
  %522 = vmatmul.f32.gmra.mxu0 %v452
  %v523 = vpop.f32.mrf.mxu0
  %v524 = vadd.f32 %v477, %v523
  %525 = vmatmul.f32.gmra.mxu0 %v453
  %v526 = vpop.f32.mrf.mxu0
  %v527 = vadd.f32 %v477, %v526
  %528 = vmatmul.f32.gmra.mxu0 %v454
  %v529 = vpop.f32.mrf.mxu0
  %v530 = vadd.f32 %v477, %v529
  %531 = vmatmul.f32.gmra.mxu0 %v455
  %v532 = vpop.f32.mrf.mxu0
  %v533 = vadd.f32 %v477, %v532
  %534 = vmatmul.f32.gmra.mxu0 %v456
  %v535 = vpop.f32.mrf.mxu0
  %v536 = vadd.f32 %v477, %v535
  %537 = vmatmul.f32.gmra.mxu0 %v457
  %v538 = vpop.f32.mrf.mxu0
  %v539 = vadd.f32 %v477, %v538
  %540 = vmatmul.f32.gmra.mxu0 %v458
  %v541 = vpop.f32.mrf.mxu0
  %v542 = vadd.f32 %v477, %v541
  %543 = vdwg.mxu0
  %v544 = vtanh.pop %v497
  %v545 = vtanh.pop %v500
  %v546 = vtanh.pop %v503
  %v547 = vtanh.pop %v506
  %v548 = vtanh.pop %v509
  %v549 = vtanh.pop %v512
  %v550 = vtanh.pop %v515
  %v551 = vtanh.pop %v518
  %v552 = vtanh.pop %v521
  %v553 = vtanh.pop %v524
  %v554 = vtanh.pop %v527
  %v555 = vtanh.pop %v530
  %v556 = vtanh.pop %v533
  %v557 = vtanh.pop %v536
  %v558 = vtanh.pop %v539
  %v559 = vtanh.pop %v542
  %v560 = vld [vmem:[%s7] sm:$0xff]
  %v561 = vld [vmem:[%s7 + $0x8] sm:$0xff]
  %v562 = vld [vmem:[%s7 + $0x10] sm:$0xff]
  %v563 = vld [vmem:[%s7 + $0x18] sm:$0xff]
  %v564 = vld [vmem:[%s7 + $0x20] sm:$0xff]
  %v565 = vld [vmem:[%s7 + $0x28] sm:$0xff]
  %v566 = vld [vmem:[%s7 + $0x30] sm:$0xff]
  %v567 = vld [vmem:[%s7 + $0x38] sm:$0xff]
  %v568 = vld [vmem:[%s8] sm:$0x1]
  %v570 = vperm.slane %v568, 0
  %vm572 = vcmask 523264
  %v574 = vsel %vm572, %v544, 0
  %v577 = vsel %vm572, %v545, 0
  %v580 = vsel %vm572, %v546, 0
  %v583 = vsel %vm572, %v547, 0
  %v586 = vsel %vm572, %v548, 0
  %v589 = vsel %vm572, %v549, 0
  %v592 = vsel %vm572, %v550, 0
  %v595 = vsel %vm572, %v551, 0
  %v598 = vsel %vm572, %v552, 0
  %v601 = vsel %vm572, %v553, 0
  %v604 = vsel %vm572, %v554, 0
  %v607 = vsel %vm572, %v555, 0
  %v610 = vsel %vm572, %v556, 0
  %v613 = vsel %vm572, %v557, 0
  %v616 = vsel %vm572, %v558, 0
  %v619 = vsel %vm572, %v559, 0
  %621 = vmatpush.msra.mxu0 0.0
  %622 = vmatpush.msra.mxu0 0.0
  %623 = vmatpush.msra.mxu0 0.0
  %624 = vmatpush.msra.mxu0 0.0
  %625 = vmatpush.msra.mxu0 0.0
  %626 = vmatpush.msra.mxu0 0.0
  %627 = vmatpush.msra.mxu0 0.0
  %628 = vmatpush.msra.mxu0 0.0
  %629 = vmatpush.msra.mxu0 %v567
  %630 = vmatpush.msra.mxu0 %v566
  %631 = vmatpush.msra.mxu0 %v565
  %632 = vmatpush.msra.mxu0 %v564
  %633 = vmatpush.msra.mxu0 %v563
  %634 = vmatpush.msra.mxu0 %v562
  %635 = vmatpush.msra.mxu0 %v561
  %636 = vmatpush.msra.mxu0 %v560
  %637 = vmatmul.f32.gmra.mxu0 %v574
  %v638 = vpop.f32.mrf.mxu0
  %v639 = vadd.f32 %v570, %v638
  %640 = vmatmul.f32.gmra.mxu0 %v577
  %v641 = vpop.f32.mrf.mxu0
  %v642 = vadd.f32 %v570, %v641
  %643 = vmatmul.f32.gmra.mxu0 %v580
  %v644 = vpop.f32.mrf.mxu0
  %v645 = vadd.f32 %v570, %v644
  %646 = vmatmul.f32.gmra.mxu0 %v583
  %v647 = vpop.f32.mrf.mxu0
  %v648 = vadd.f32 %v570, %v647
  %649 = vmatmul.f32.gmra.mxu0 %v586
  %v650 = vpop.f32.mrf.mxu0
  %v651 = vadd.f32 %v570, %v650
  %652 = vmatmul.f32.gmra.mxu0 %v589
  %v653 = vpop.f32.mrf.mxu0
  %v654 = vadd.f32 %v570, %v653
  %655 = vmatmul.f32.gmra.mxu0 %v592
  %v656 = vpop.f32.mrf.mxu0
  %v657 = vadd.f32 %v570, %v656
  %658 = vmatmul.f32.gmra.mxu0 %v595
  %v659 = vpop.f32.mrf.mxu0
  %v660 = vadd.f32 %v570, %v659
  %661 = vmatmul.f32.gmra.mxu0 %v598
  %v662 = vpop.f32.mrf.mxu0
  %v663 = vadd.f32 %v570, %v662
  %664 = vmatmul.f32.gmra.mxu0 %v601
  %v665 = vpop.f32.mrf.mxu0
  %v666 = vadd.f32 %v570, %v665
  %667 = vmatmul.f32.gmra.mxu0 %v604
  %v668 = vpop.f32.mrf.mxu0
  %v669 = vadd.f32 %v570, %v668
  %670 = vmatmul.f32.gmra.mxu0 %v607
  %v671 = vpop.f32.mrf.mxu0
  %v672 = vadd.f32 %v570, %v671
  %673 = vmatmul.f32.gmra.mxu0 %v610
  %v674 = vpop.f32.mrf.mxu0
  %v675 = vadd.f32 %v570, %v674
  %676 = vmatmul.f32.gmra.mxu0 %v613
  %v677 = vpop.f32.mrf.mxu0
  %v678 = vadd.f32 %v570, %v677
  %679 = vmatmul.f32.gmra.mxu0 %v616
  %v680 = vpop.f32.mrf.mxu0
  %v681 = vadd.f32 %v570, %v680
  %682 = vmatmul.f32.gmra.mxu0 %v619
  %v683 = vpop.f32.mrf.mxu0
  %v684 = vadd.f32 %v570, %v683
  %685 = vdwg.mxu0
  %v686 = vtanh.pop %v639
  %v687 = vtanh.pop %v642
  %v688 = vtanh.pop %v645
  %v689 = vtanh.pop %v648
  %v690 = vtanh.pop %v651
  %v691 = vtanh.pop %v654
  %v692 = vtanh.pop %v657
  %v693 = vtanh.pop %v660
  %v694 = vtanh.pop %v663
  %v695 = vtanh.pop %v666
  %v696 = vtanh.pop %v669
  %v697 = vtanh.pop %v672
  %v698 = vtanh.pop %v675
  %v699 = vtanh.pop %v678
  %v700 = vtanh.pop %v681
  %v701 = vtanh.pop %v684
  %v702 = vld [vmem:[%s9] sm:$0x1]
  %v703 = vld [vmem:[#allocation2] sm:$0x1]
  %705 = vset.pattern.permute.xlu0 0
  %706 = vperm.xlu0 %705, %v703
  %v707 = vpop.permute.xlu0 %706
  %v709 = vperm.slane %v707, 0
  %vm710 = vcmask 261120
  %v712 = vsel %vm710, %v702, 0
  %v715 = vsel %vm710, %v686, 0
  %v718 = vsel %vm710, %v687, 0
  %v721 = vsel %vm710, %v688, 0
  %v724 = vsel %vm710, %v689, 0
  %v727 = vsel %vm710, %v690, 0
  %v730 = vsel %vm710, %v691, 0
  %v733 = vsel %vm710, %v692, 0
  %v736 = vsel %vm710, %v693, 0
  %v739 = vsel %vm710, %v694, 0
  %v742 = vsel %vm710, %v695, 0
  %v745 = vsel %vm710, %v696, 0
  %v748 = vsel %vm710, %v697, 0
  %v751 = vsel %vm710, %v698, 0
  %v754 = vsel %vm710, %v699, 0
  %v757 = vsel %vm710, %v700, 0
  %v760 = vsel %vm710, %v701, 0
  %762 = vmatpush.xpose.msra.mxu0 %v760
  %763 = vmatpush.xpose.msra.mxu0 %v757
  %764 = vmatpush.xpose.msra.mxu0 %v754
  %765 = vmatpush.xpose.msra.mxu0 %v751
  %766 = vmatpush.xpose.msra.mxu0 %v748
  %767 = vmatpush.xpose.msra.mxu0 %v745
  %768 = vmatpush.xpose.msra.mxu0 %v742
  %769 = vmatpush.xpose.msra.mxu0 %v739
  %770 = vmatpush.xpose.msra.mxu0 %v736
  %771 = vmatpush.xpose.msra.mxu0 %v733
  %772 = vmatpush.xpose.msra.mxu0 %v730
  %773 = vmatpush.xpose.msra.mxu0 %v727
  %774 = vmatpush.xpose.msra.mxu0 %v724
  %775 = vmatpush.xpose.msra.mxu0 %v721
  %776 = vmatpush.xpose.msra.mxu0 %v718
  %777 = vmatpush.xpose.msra.mxu0 %v715
  %778 = vmatmul.f32.gmra.mxu0 %v712
  %v779 = vpop.f32.mrf.mxu0
  %v780 = vadd.f32 %v709, %v779
  %781 = vdwg.mxu0
  %782 = vst [vmem:[%s11] sm:$0x1] %v780
  // Predicated region
  $region46: #{mlp_forward.1} parent=0 // pred_check
    _
  $region47: #{mlp_forward.1} parent=0 // pred_check_branch
    %784 = sbr.rel (0) target = $region49
  $region48: #{mlp_forward.1} parent=0 // pred_region
    _
  $region49: #{mlp_forward.1} parent=0 // pred_fallthru
    _
  // Predicated region
  $region50: #{mlp_forward.1} parent=0 // pred_check
    _
  $region51: #{mlp_forward.1} parent=0 // pred_check_branch
    %786 = sbr.rel (0) target = $region53
  $region52: #{mlp_forward.1} parent=0 // pred_region
    _
  $region53: #{mlp_forward.1} parent=0 // pred_fallthru
    _

</llo_original>
